<compile_context>
chip_gen: v7x
topology: tpu7x:2x2x1
jax: 0.10.0
libtpu: 0.0.40
codegen_flags: <defaults>
</compile_context>

<pallas_src>
import functools

import jax
import jax.numpy as jnp
import numpy as np
from jax.experimental import pallas as pl
from jax.experimental.pallas import tpu as pltpu

W = 10.0
E = 2.0

LANES = 128
MAX_BLOCK_ROWS = 4096  # (4096, 128) f32 tile = 2 MiB per input per pipeline buffer


def _wing_kernel(x_ref, t_ref, out_ref, *, w, e, c):
    x = x_ref[...].astype(jnp.float32)
    t = t_ref[...].astype(jnp.float32)

    # weight = 1 everywhere except t == -1 (ignore label)
    weight = jnp.where(t == -1.0, 0.0, 1.0)
    diff = weight * (x - t)
    abs_diff = jnp.abs(diff)

    # wing loss: small-residual log branch / large-residual linear branch
    y = jnp.where(abs_diff < w,
                  w * jnp.log1p(abs_diff * (1.0 / e)),
                  abs_diff - c)

    # Reduce this block to one (8, 128) vreg partial using only VPU adds
    # (sublane-group split keeps the (8, 128) tiling; no cross-lane XLU work here).
    rows = x_ref.shape[0]
    out_ref[...] = y.reshape(rows // 8, 8, LANES).sum(axis=0)


def wingloss(x, t, w=W, e=E):
    assert x.shape == t.shape
    c = float(w - w * np.log(1.0 + w / e))
    n = x.size

    # Flatten to a lane-dense (rows, 128) slab, pad the tail with t = -1
    # (weight 0 -> exact zero contribution to the sum).
    rows_needed = max(-(-n // LANES), 1)
    block_rows = min(MAX_BLOCK_ROWS, ((rows_needed + 7) // 8) * 8)
    rows_padded = ((rows_needed + block_rows - 1) // block_rows) * block_rows
    n_blocks = rows_padded // block_rows
    n_padded = rows_padded * LANES

    x_flat = x.reshape(-1).astype(jnp.float32)
    t_flat = t.reshape(-1).astype(jnp.float32)
    pad = n_padded - n
    if pad:
        x_flat = jnp.pad(x_flat, (0, pad))
        t_flat = jnp.pad(t_flat, (0, pad), constant_values=-1.0)

    x2d = x_flat.reshape(rows_padded, LANES)
    t2d = t_flat.reshape(rows_padded, LANES)

    kernel = functools.partial(_wing_kernel, w=float(w), e=float(e), c=c)

    partials = pl.pallas_call(
        kernel,
        out_shape=jax.ShapeDtypeStruct((n_blocks * 8, LANES), jnp.float32),
        grid_spec=pltpu.PrefetchScalarGridSpec(
            num_scalar_prefetch=0,
            grid=(n_blocks,),
            in_specs=[
                pl.BlockSpec((block_rows, LANES), lambda i: (i, 0)),
                pl.BlockSpec((block_rows, LANES), lambda i: (i, 0)),
            ],
            out_specs=pl.BlockSpec((8, LANES), lambda i: (i, 0)),
        ),
        compiler_params=pltpu.CompilerParams(
            dimension_semantics=("parallel",),
        ),
    )(x2d, t2d)

    # Final tiny cross-block / cross-lane reduction outside the kernel.
    return jnp.sum(partials)


def wingloss_ref(x, t, w=W, e=E):
    c = w - w * np.log(1.0 + w / e)
    weight = jnp.where(t == -1.0, 0.0, 1.0)
    diff = weight * (x - t)
    abs_diff = jnp.abs(diff)
    flag = (abs_diff < w).astype(jnp.float32)
    y = flag * w * jnp.log(1.0 + abs_diff / e) + (1.0 - flag) * (abs_diff - c)
    return jnp.sum(y)


if __name__ == "__main__":
    key = jax.random.PRNGKey(0)
    k1, k2, k3 = jax.random.split(key, 3)

    shape = (2, 4, 16, 16)  # NCHW-like landmark/regression map
    x = jax.random.normal(k1, shape, dtype=jnp.float32) * 5.0
    t = jax.random.normal(k2, shape, dtype=jnp.float32) * 5.0
    # sprinkle in "ignore" targets (t == -1) to exercise the weight mask
    mask = jax.random.bernoulli(k3, p=0.1, shape=shape)
    t = jnp.where(mask, -1.0, t)

    out = jax.block_until_ready(wingloss(x, t))
    ref = wingloss_ref(x, t)
    assert jnp.allclose(out, ref, rtol=1e-5, atol=1e-4), (out, ref)

    print("KERNEL_OK")
</pallas_src>

<mosaic_0001>
module attributes {stable_mosaic.version = 11 : i64} {
  func.func @_wing_kernel(%arg0: i32, %arg1: memref<16x128xf32, #tpu.memory_space<vmem>>, %arg2: memref<16x128xf32, #tpu.memory_space<vmem>>, %arg3: memref<8x128xf32, #tpu.memory_space<vmem>>) attributes {dimension_semantics = [#tpu.dimension_semantics<parallel>], iteration_bounds = array<i64: 1>, scalar_prefetch = 0 : i64, scratch_operands = 0 : i64, tpu.core_type = #tpu.core_type<tc>, window_params = [{transform_indices = @transform_0, window_bounds = array<i64: 16, 128>}, {transform_indices = @transform_1, window_bounds = array<i64: 16, 128>}, {transform_indices = @transform_2, window_bounds = array<i64: 8, 128>}]} {
    %c0 = arith.constant 0 : index
    %c0_0 = arith.constant 0 : index
    %0 = vector.load %arg1[%c0, %c0_0] : memref<16x128xf32, #tpu.memory_space<vmem>>, vector<16x128xf32>
    %c0_1 = arith.constant 0 : index
    %c0_2 = arith.constant 0 : index
    %1 = vector.load %arg2[%c0_1, %c0_2] : memref<16x128xf32, #tpu.memory_space<vmem>>, vector<16x128xf32>
    %cst = arith.constant -1.000000e+00 : f32
    %2 = vector.broadcast %cst : f32 to vector<16x128xf32>
    %3 = arith.cmpf oeq, %1, %2 : vector<16x128xf32>
    %cst_3 = arith.constant 0.000000e+00 : f32
    %cst_4 = arith.constant 1.000000e+00 : f32
    %4 = vector.broadcast %cst_3 : f32 to vector<16x128xf32>
    %5 = vector.broadcast %cst_4 : f32 to vector<16x128xf32>
    %6 = arith.select %3, %4, %5 : vector<16x128xi1>, vector<16x128xf32>
    %7 = arith.subf %0, %1 : vector<16x128xf32>
    %8 = arith.mulf %6, %7 : vector<16x128xf32>
    %9 = math.absf %8 : vector<16x128xf32>
    %cst_5 = arith.constant 1.000000e+01 : f32
    %10 = vector.broadcast %cst_5 : f32 to vector<16x128xf32>
    %11 = arith.cmpf olt, %9, %10 : vector<16x128xf32>
    %cst_6 = arith.constant 5.000000e-01 : f32
    %12 = vector.broadcast %cst_6 : f32 to vector<16x128xf32>
    %13 = arith.mulf %9, %12 : vector<16x128xf32>
    %14 = math.log1p %13 : vector<16x128xf32>
    %cst_7 = arith.constant 1.000000e+01 : f32
    %15 = vector.broadcast %cst_7 : f32 to vector<16x128xf32>
    %16 = arith.mulf %15, %14 : vector<16x128xf32>
    %cst_8 = arith.constant -7.9175949 : f32
    %17 = vector.broadcast %cst_8 : f32 to vector<16x128xf32>
    %18 = arith.subf %9, %17 : vector<16x128xf32>
    %19 = arith.select %11, %16, %18 : vector<16x128xi1>, vector<16x128xf32>
    %20 = vector.shape_cast %19 : vector<16x128xf32> to vector<2x8x128xf32>
    %cst_9 = arith.constant dense<0.000000e+00> : vector<8x128xf32>
    %21 = vector.multi_reduction <add>, %20, %cst_9 [0] : vector<2x8x128xf32> to vector<8x128xf32>
    %c0_10 = arith.constant 0 : index
    %c0_11 = arith.constant 0 : index
    %22 = vector.load %arg3[%c0_10, %c0_11] : memref<8x128xf32, #tpu.memory_space<vmem>>, vector<8x128xf32>
    tpu.vector_store %arg3[%c0_10, %c0_11], %21 {strides = array<i32>} : memref<8x128xf32, #tpu.memory_space<vmem>>, vector<8x128xf32>,
    return
  }
  func.func @transform_0(%arg0: i32) -> (i32, i32) {
    %c0_i32 = arith.constant 0 : i32
    %c0_i32_0 = arith.constant 0 : i32
    return %arg0, %c0_i32 : i32, i32
  }
  func.func @transform_1(%arg0: i32) -> (i32, i32) {
    %c0_i32 = arith.constant 0 : i32
    %c0_i32_0 = arith.constant 0 : i32
    return %arg0, %c0_i32 : i32, i32
  }
  func.func @transform_2(%arg0: i32) -> (i32, i32) {
    %c0_i32 = arith.constant 0 : i32
    %c0_i32_0 = arith.constant 0 : i32
    return %arg0, %c0_i32 : i32, i32
  }
}

</mosaic_0001>

<llo_original>
// kernel: tpu_custom_call.1
$region0: #{tpu_custom_call.1}
  #allocation0 [shape = 'u32[]', space=smem, size = 0x4, offset = 0x4, fixed_abs, tag = 'smem constant byte address 0x4 - core index']
  #allocation1 [shape = 'u32[144,128]{1,0:T(1,128)}', space=vmem, size = 0x12000, scoped, tag = 'internal scratch']
  %s0 = inlined_call_operand.hbm [shape: f32[16,128], index: 0, kind: input, shape index: {}]
  %s1 = inlined_call_operand.hbm [shape: f32[16,128], index: 1, kind: input, shape index: {}]
  %s2 = inlined_call_operand.hbm [shape: f32[8,128], index: 2, kind: output, shape index: {}]
  %s3 = sld [smem:[#allocation0]]
  $region26: #{tpu_custom_call.1} parent=0
    _
  %s5 = ssub.s32 1, %s3
  %s6 = scalar_select 0, %s5, %s3
  $region1: #{tpu_custom_call.1} parent=0
    #allocation2 [shape = 'u8[8192]{0}', space=vmem, size = 0x2000, scoped, tag = 'input window, operand 0, single buffered']
    #allocation3 [shape = 's32[1]{0}', space=sflag, size = 0x4, scoped, tag = 'scoped memory for tpu_custom_call.1']
    #allocation4 [shape = 's32[1]{0}', space=sflag, size = 0x4, scoped, tag = 'scoped memory for tpu_custom_call.1']
    #allocation5 [shape = 'u8[8192]{0}', space=vmem, size = 0x2000, scoped, tag = 'input window, operand 1, single buffered']
    #allocation6 [shape = 's32[1]{0}', space=sflag, size = 0x4, scoped, tag = 'scoped memory for tpu_custom_call.1']
    #allocation7 [shape = 'u8[4096]{0}', space=vmem, size = 0x1000, scoped, tag = 'output window, operand 0, single buffered']
    %7 = vsyncpa [#allocation3], 0
    %8 = vsyncpa [#allocation6], 0
    %9 = vsyncpa [#allocation4], 0
    // Predicated region
    $region2: #{tpu_custom_call.1} parent=1 // pred_check
      _
    $region3: #{tpu_custom_call.1} parent=1 // pred_check_branch
      %11 = sbr.rel (0) target = $region5
    $region4: #{tpu_custom_call.1} parent=1 // pred_region
      %s13 = ssub.s32 256, 256
      %14 = vsyncadd [#allocation3], %s13
      %s15 = sshll.u32 [#allocation2], 4
      %s16 = int_to_ptr.vmem [resolvable:$true] %s15
      %21 = dma.hbm_to_vmem [thread:$0]  %s0, 256, %s16, [#allocation3], 128, 128, 8
    $region5: #{tpu_custom_call.1} parent=1 // pred_fallthru
      _
    // Predicated region
    $region6: #{tpu_custom_call.1} parent=1 // pred_check
      _
    $region7: #{tpu_custom_call.1} parent=1 // pred_check_branch
      %23 = sbr.rel (0) target = $region9
    $region8: #{tpu_custom_call.1} parent=1 // pred_region
      %s25 = ssub.s32 256, 256
      %26 = vsyncadd [#allocation6], %s25
      %s27 = sshll.u32 [#allocation5], 4
      %s28 = int_to_ptr.vmem [resolvable:$true] %s27
      %33 = dma.hbm_to_vmem [thread:$0]  %s1, 256, %s28, [#allocation6], 128, 128, 8
    $region9: #{tpu_custom_call.1} parent=1 // pred_fallthru
      _
    // Predicated region
    $region10: #{tpu_custom_call.1} parent=1 // pred_check
      _
    $region11: #{tpu_custom_call.1} parent=1 // pred_check_branch
      %35 = sbr.rel (0) target = $region13
    $region12: #{tpu_custom_call.1} parent=1 // pred_region
      %36 = dma.done [#allocation3], 256
    $region13: #{tpu_custom_call.1} parent=1 // pred_fallthru
      _
    // Predicated region
    $region14: #{tpu_custom_call.1} parent=1 // pred_check
      _
    $region15: #{tpu_custom_call.1} parent=1 // pred_check_branch
      %38 = sbr.rel (0) target = $region17
    $region16: #{tpu_custom_call.1} parent=1 // pred_region
      %39 = dma.done [#allocation6], 256
    $region17: #{tpu_custom_call.1} parent=1 // pred_fallthru
      _
    %v40 = vld [vmem:[#allocation2] sm:$0xff]
    %v41 = vld [vmem:[#allocation2 + $0x8] sm:$0xff]
    %v42 = vld [vmem:[#allocation5] sm:$0xff]
    %v43 = vld [vmem:[#allocation5 + $0x8] sm:$0xff]
    %vm44 = vcmp.eq.f32.partialorder %v42, -1.0
    %vm45 = vcmp.eq.f32.partialorder %v43, -1.0
    %v46 = vsel %vm44, 0.0, 1.0
    %v47 = vsel %vm45, 0.0, 1.0
    %v48 = vsub.f32 %v40, %v42
    %v49 = vsub.f32 %v41, %v43
    %v50 = vmul.f32 %v46, %v48
    %v51 = vmul.f32 %v47, %v49
    %v52 = vand.u32 2147483647, %v50
    %v53 = vand.u32 2147483647, %v51
    %vm54 = vcmp.lt.f32.partialorder %v52, 10.0
    %vm55 = vcmp.lt.f32.partialorder %v53, 10.0
    %v56 = vmul.f32 %v52, 0.5
    %v57 = vmul.f32 %v53, 0.5
    %v58 = vadd.f32 %v56, 1.0
    %v59 = vlog2.pop %v58
    %v60 = vmul.f32 %v59, 0.6931472
    %v61 = vmul.f32 -0.5, %v56
    %v62 = vadd.f32 %v61, 1.0
    %v63 = vmul.f32 %v62, %v56
    %v64 = vand.u32 2147483647, %v56
    %vm65 = vcmp.lt.f32.partialorder %v64, 0.0004427343
    %v66 = vsel %vm65, %v63, %v60
    %v67 = vadd.f32 %v57, 1.0
    %v68 = vlog2.pop %v67
    %v69 = vmul.f32 %v68, 0.6931472
    %v70 = vmul.f32 -0.5, %v57
    %v71 = vadd.f32 %v70, 1.0
    %v72 = vmul.f32 %v71, %v57
    %v73 = vand.u32 2147483647, %v57
    %vm74 = vcmp.lt.f32.partialorder %v73, 0.0004427343
    %v75 = vsel %vm74, %v72, %v69
    %v76 = vmul.f32 %v66, 10.0
    %v77 = vmul.f32 %v75, 10.0
    %v78 = vsub.f32 %v52, -7.917595
    %v79 = vsub.f32 %v53, -7.917595
    %v80 = vsel %vm54, %v76, %v78
    %v81 = vsel %vm55, %v77, %v79
    %v82 = vadd.f32 %v80, %v81
    %83 = vst [vmem:[#allocation7] sm:$0xff] %v82
    // Predicated region
    $region18: #{tpu_custom_call.1} parent=1 // pred_check
      _
    $region19: #{tpu_custom_call.1} parent=1 // pred_check_branch
      %85 = sbr.rel (0) target = $region21
    $region20: #{tpu_custom_call.1} parent=1 // pred_region
      %s87 = ssub.s32 128, 128
      %88 = vsyncadd [#allocation4], %s87
      %s90 = sshll.u32 [#allocation7], 4
      %s91 = int_to_ptr.vmem [resolvable:$true] %s90
      %93 = dma.vmem_to_hbm [thread:$0]  %s91, 128, %s2, [#allocation4]
    $region21: #{tpu_custom_call.1} parent=1 // pred_fallthru
      _
    // Predicated region
    $region22: #{tpu_custom_call.1} parent=1 // pred_check
      _
    $region23: #{tpu_custom_call.1} parent=1 // pred_check_branch
      %95 = sbr.rel (0) target = $region25
    $region24: #{tpu_custom_call.1} parent=1 // pred_region
      %96 = dma.done [#allocation4], 128
    $region25: #{tpu_custom_call.1} parent=1 // pred_fallthru
      _
    %97 = vsyncpa [#allocation3], 1
    %98 = vsyncpa [#allocation6], 1
    %99 = vsyncpa [#allocation4], 1

</llo_original>
